<compile_context>
chip_gen: v7x
topology: tpu7x:2x2x1
jax: 0.10.0
libtpu: 0.0.40
codegen_flags: <defaults>
</compile_context>

<pallas_src>
import numpy as np
import jax
import jax.numpy as jnp
from jax.experimental import pallas as pl
from jax.experimental.pallas import tpu as pltpu  # noqa: F401  (kept for TPU-specific extensions)

# ----------------------- small STFT configuration ---------------------------
FILTER_LENGTH = 32
HOP_LENGTH = 8
WIN_LENGTH = 32
CUTOFF = FILTER_LENGTH // 2 + 1            # 17
PAD = FILTER_LENGTH // 2                   # 16

B = 2
T = 64
N_FRAMES = T // HOP_LENGTH + 1                             # 9   (conv1d output frames)
N_FULL = FILTER_LENGTH + HOP_LENGTH * (N_FRAMES - 1)       # 96  (conv_transpose1d length)
N_PAD = 128                                                # lane-dense (128) padded output
K_FWD = N_FRAMES * FILTER_LENGTH                           # 288 (flattened frame axis)
N_MID = N_FRAMES * 2 * CUTOFF                              # 306 (flattened spectrum axis)


# ----------------------- deterministic parameter setup ----------------------
def _hann_periodic(n):
    # scipy.signal.get_window('hann', n, fftbins=True)
    return 0.5 - 0.5 * np.cos(2.0 * np.pi * np.arange(n) / n)


def build_params():
    fourier_basis = np.fft.fft(np.eye(FILTER_LENGTH))
    fb = np.vstack([np.real(fourier_basis[:CUTOFF, :]),
                    np.imag(fourier_basis[:CUTOFF, :])])            # (2C, FL)
    scale = FILTER_LENGTH / HOP_LENGTH
    inv_b = np.linalg.pinv(scale * fb).T                            # (2C, FL)

    win = _hann_periodic(WIN_LENGTH)                                # pad_center is a no-op (win==fft)
    fwd_basis = (fb * win[None, :]).astype(np.float32)              # (2C, FL)
    inv_basis = (inv_b * win[None, :]).astype(np.float32)           # (2C, FL)

    # window_sumsquare (normalize with norm=None is identity); fold the
    # "divide where > tiny" and the filter_length/hop scaling into one vector.
    win_sq = (win.astype(np.float32)) ** 2
    wss = np.zeros(N_FULL, dtype=np.float32)
    for i in range(N_FRAMES):
        s = i * HOP_LENGTH
        wss[s:min(N_FULL, s + FILTER_LENGTH)] += win_sq[:max(0, min(FILTER_LENGTH, N_FULL - s))]
    tiny = np.finfo(np.float32).tiny
    scale_vec = np.where(wss > tiny, scale / wss, scale).astype(np.float32)   # (N_FULL,)

    # ---- Stage-1 operand: fused real+imag forward basis, one matmul over all
    # (batch, frame) rows.  Laid out block-diagonally so the matmul output is
    # already [re_0|im_0|re_1|im_1|...] along the lane dimension (no in-kernel
    # reshape needed).
    fwd_comb = np.ascontiguousarray(fwd_basis.T)                    # (FL, 2C)
    fwd_bd = np.zeros((K_FWD, N_MID), dtype=np.float32)
    for f in range(N_FRAMES):
        fwd_bd[f * FILTER_LENGTH:(f + 1) * FILTER_LENGTH,
               f * 2 * CUTOFF:(f + 1) * 2 * CUTOFF] = fwd_comb

    # ---- Stage-2 operand: conv_transpose1d overlap-add expressed as ONE matmul.
    # Inverse basis rows pre-shifted by f*hop, flattened over frames; columns
    # zero-padded from N_FULL=96 to 128 lanes.
    inv_flat = np.zeros((N_MID, N_PAD), dtype=np.float32)
    for f in range(N_FRAMES):
        s = f * HOP_LENGTH
        inv_flat[f * 2 * CUTOFF:(f + 1) * 2 * CUTOFF, s:s + FILTER_LENGTH] = inv_basis

    scale_pad = np.zeros(N_PAD, dtype=np.float32)
    scale_pad[:N_FULL] = scale_vec                                  # padded tail stays 0

    return fwd_basis, inv_basis, scale_vec, fwd_bd, inv_flat, scale_pad


# ------------------------------ Pallas kernel --------------------------------
def stft_kernel(frames_ref, fwd_ref, inv_ref, scale_ref, out_ref):
    # Forward transform (strided conv1d): one MXU matmul for all batch*frame rows,
    # real and imag parts fused along the lane dim.
    spec = jnp.dot(frames_ref[...], fwd_ref[...],
                   preferred_element_type=jnp.float32)              # (B, nF*2C)

    # The PyTorch module computes mag=sqrt(re^2+im^2), phase=atan2(im,re) and then
    # recombines mag*cos(phase)==re, mag*sin(phase)==im (exact, including mag==0),
    # so the recombination block is an identity and is omitted.

    # Inverse transform (conv_transpose1d + overlap-add): one matmul against the
    # hop-shifted, frame-flattened inverse basis.
    y = jnp.dot(spec, inv_ref[...],
                preferred_element_type=jnp.float32)                 # (B, N_PAD)

    # window_sumsquare correction + filter_length/hop scaling (folded host-side).
    out_ref[...] = y * scale_ref[...]


def stft_pallas_call(frames_flat, fwd_bd, inv_flat, scale_pad2d):
    return pl.pallas_call(
        stft_kernel,
        out_shape=jax.ShapeDtypeStruct((B, N_PAD), jnp.float32),
        grid=(1,),
        in_specs=[
            pl.BlockSpec((B, K_FWD), lambda i: (0, 0)),
            pl.BlockSpec((K_FWD, N_MID), lambda i: (0, 0)),
            pl.BlockSpec((N_MID, N_PAD), lambda i: (0, 0)),
            pl.BlockSpec((1, N_PAD), lambda i: (0, 0)),
        ],
        out_specs=pl.BlockSpec((B, N_PAD), lambda i: (0, 0)),
    )(frames_flat, fwd_bd, inv_flat, scale_pad2d)


# ------------------------------ host-side glue -------------------------------
_FRAME_IDX = np.arange(N_FRAMES)[:, None] * HOP_LENGTH + np.arange(FILTER_LENGTH)[None, :]


def stft_forward(x, fwd_bd, inv_flat, scale_pad):
    # x: (B, T) float32 audio
    xp = jnp.pad(x, ((0, 0), (PAD, PAD)), mode='reflect')          # reflect pad (matches torch)
    frames = xp[:, _FRAME_IDX]                                     # (B, nF, FL)
    frames_flat = frames.reshape(B, K_FWD)                         # (B, nF*FL)
    # TODO(synk): at production STFT sizes, extract frames with strided in-kernel
    # reads/DMA (avoid the 4x host-side gather duplication) and replace the
    # pre-scattered inverse basis with an in-kernel hop-shifted overlap-add.
    out_full = stft_pallas_call(frames_flat,
                                jnp.asarray(fwd_bd), jnp.asarray(inv_flat),
                                jnp.asarray(scale_pad)[None, :])   # (B, N_PAD)
    # trim filter_length/2 on each side -> (B, 1, T), same as torch
    return out_full[:, None, PAD:PAD + T]


# ------------------------------ numpy reference -------------------------------
def numpy_reference(x, fwd_basis, inv_basis, scale_vec):
    # Full-fidelity reference including the mag/phase -> cos/sin recombination.
    x = np.asarray(x, dtype=np.float64)
    xp = np.pad(x, ((0, 0), (PAD, PAD)), mode='reflect')
    frames = xp[:, _FRAME_IDX]                                     # (B, nF, FL)
    fwd = frames @ fwd_basis.astype(np.float64).T                  # (B, nF, 2C)
    real, imag = fwd[..., :CUTOFF], fwd[..., CUTOFF:]
    mag = np.sqrt(real ** 2 + imag ** 2)
    phase = np.arctan2(imag, real)
    recomb = np.concatenate([mag * np.cos(phase), mag * np.sin(phase)], axis=-1)
    contrib = recomb @ inv_basis.astype(np.float64)                # (B, nF, FL)
    y = np.zeros((x.shape[0], N_FULL), dtype=np.float64)
    for f in range(N_FRAMES):
        s = f * HOP_LENGTH
        y[:, s:s + FILTER_LENGTH] += contrib[:, f]
    y *= scale_vec.astype(np.float64)[None, :]
    return y[:, None, PAD:PAD + T]


# ----------------------------------- main -------------------------------------
if __name__ == "__main__":
    (fwd_basis, inv_basis, scale_vec,
     fwd_bd, inv_flat, scale_pad) = build_params()

    key = jax.random.PRNGKey(0)
    x = jax.random.normal(key, (B, T), dtype=jnp.float32)

    out = stft_forward(x, fwd_bd, inv_flat, scale_pad)
    out = jax.block_until_ready(out)

    assert out.shape == (B, 1, T), out.shape
    ref = numpy_reference(np.asarray(x), fwd_basis, inv_basis, scale_vec)
    np.testing.assert_allclose(np.asarray(out, dtype=np.float64), ref,
                               rtol=1e-4, atol=1e-4)

    print("KERNEL_OK")
</pallas_src>

<mosaic_0001>
module attributes {stable_mosaic.version = 11 : i64} {
  func.func @stft_kernel(%arg0: i32, %arg1: memref<2x288xf32, #tpu.memory_space<vmem>>, %arg2: memref<288x306xf32, #tpu.memory_space<vmem>>, %arg3: memref<306x128xf32, #tpu.memory_space<vmem>>, %arg4: memref<1x128xf32, #tpu.memory_space<vmem>>, %arg5: memref<2x128xf32, #tpu.memory_space<vmem>>) attributes {dimension_semantics = [#tpu.dimension_semantics<arbitrary>], iteration_bounds = array<i64: 1>, scalar_prefetch = 0 : i64, scratch_operands = 0 : i64, tpu.core_type = #tpu.core_type<tc>, window_params = [{pipeline_mode = #tpu.pipeline_mode<synchronous>, transform_indices = @transform_0, window_bounds = array<i64: 2, 288>}, {pipeline_mode = #tpu.pipeline_mode<synchronous>, transform_indices = @transform_1, window_bounds = array<i64: 288, 306>}, {pipeline_mode = #tpu.pipeline_mode<synchronous>, transform_indices = @transform_2, window_bounds = array<i64: 306, 128>}, {pipeline_mode = #tpu.pipeline_mode<synchronous>, transform_indices = @transform_3, window_bounds = array<i64: 1, 128>}, {pipeline_mode = #tpu.pipeline_mode<synchronous>, transform_indices = @transform_4, window_bounds = array<i64: 2, 128>}]} {
    %c0 = arith.constant 0 : index
    %c0_0 = arith.constant 0 : index
    %0 = vector.load %arg1[%c0, %c0_0] : memref<2x288xf32, #tpu.memory_space<vmem>>, vector<2x288xf32>
    %c0_1 = arith.constant 0 : index
    %c0_2 = arith.constant 0 : index
    %1 = vector.load %arg2[%c0_1, %c0_2] : memref<288x306xf32, #tpu.memory_space<vmem>>, vector<288x306xf32>
    %cst = arith.constant dense<0.000000e+00> : vector<2x306xf32>
    %2 = tpu.matmul %0, %1, %cst {dimension_numbers = #tpu.dot_dimension_numbers<[1], [0], [0], [1], [0, 0, 1, 1], [], []>} : vector<2x288xf32>, vector<288x306xf32>, vector<2x306xf32> -> vector<2x306xf32>
    %c0_3 = arith.constant 0 : index
    %c0_4 = arith.constant 0 : index
    %3 = vector.load %arg3[%c0_3, %c0_4] : memref<306x128xf32, #tpu.memory_space<vmem>>, vector<306x128xf32>
    %cst_5 = arith.constant dense<0.000000e+00> : vector<2x128xf32>
    %4 = tpu.matmul %2, %3, %cst_5 {dimension_numbers = #tpu.dot_dimension_numbers<[1], [0], [0], [1], [0, 0, 1, 1], [], []>} : vector<2x306xf32>, vector<306x128xf32>, vector<2x128xf32> -> vector<2x128xf32>
    %c0_6 = arith.constant 0 : index
    %c0_7 = arith.constant 0 : index
    %5 = vector.load %arg4[%c0_6, %c0_7] : memref<1x128xf32, #tpu.memory_space<vmem>>, vector<1x128xf32>
    %6 = vector.broadcast %5 : vector<1x128xf32> to vector<2x128xf32>
    %7 = arith.mulf %4, %6 : vector<2x128xf32>
    %c0_8 = arith.constant 0 : index
    %c0_9 = arith.constant 0 : index
    %8 = vector.load %arg5[%c0_8, %c0_9] : memref<2x128xf32, #tpu.memory_space<vmem>>, vector<2x128xf32>
    tpu.vector_store %arg5[%c0_8, %c0_9], %7 {strides = array<i32>} : memref<2x128xf32, #tpu.memory_space<vmem>>, vector<2x128xf32>,
    return
  }
  func.func @transform_0(%arg0: i32) -> (i32, i32) {
    %c0_i32 = arith.constant 0 : i32
    %c0_i32_0 = arith.constant 0 : i32
    %c0_i32_1 = arith.constant 0 : i32
    return %c0_i32, %c0_i32_0 : i32, i32
  }
  func.func @transform_1(%arg0: i32) -> (i32, i32) {
    %c0_i32 = arith.constant 0 : i32
    %c0_i32_0 = arith.constant 0 : i32
    %c0_i32_1 = arith.constant 0 : i32
    return %c0_i32, %c0_i32_0 : i32, i32
  }
  func.func @transform_2(%arg0: i32) -> (i32, i32) {
    %c0_i32 = arith.constant 0 : i32
    %c0_i32_0 = arith.constant 0 : i32
    %c0_i32_1 = arith.constant 0 : i32
    return %c0_i32, %c0_i32_0 : i32, i32
  }
  func.func @transform_3(%arg0: i32) -> (i32, i32) {
    %c0_i32 = arith.constant 0 : i32
    %c0_i32_0 = arith.constant 0 : i32
    %c0_i32_1 = arith.constant 0 : i32
    return %c0_i32, %c0_i32_0 : i32, i32
  }
  func.func @transform_4(%arg0: i32) -> (i32, i32) {
    %c0_i32 = arith.constant 0 : i32
    %c0_i32_0 = arith.constant 0 : i32
    %c0_i32_1 = arith.constant 0 : i32
    return %c0_i32, %c0_i32_0 : i32, i32
  }
}

</mosaic_0001>

<llo_original>
// kernel: tpu_custom_call.1
$region0: #{tpu_custom_call.1}
  #allocation0 [shape = 'u32[]', space=smem, size = 0x4, offset = 0x4, fixed_abs, tag = 'smem constant byte address 0x4 - core index']
  #allocation1 [shape = 'u32[144,128]{1,0:T(1,128)}', space=vmem, size = 0x12000, scoped, tag = 'internal scratch']
  %s0 = inlined_call_operand.hbm [shape: f32[2,288], index: 0, kind: input, shape index: {}]
  %s1 = inlined_call_operand.hbm [shape: f32[288,306], index: 1, kind: input, shape index: {}]
  %s2 = inlined_call_operand.hbm [shape: f32[306,128], index: 2, kind: input, shape index: {}]
  %s3 = inlined_call_operand.vmem [shape: f32[1,128], index: 3, kind: input, shape index: {}]
  %s4 = inlined_call_operand.hbm [shape: f32[2,128], index: 4, kind: output, shape index: {}]
  %s5 = sld [smem:[#allocation0]]
  $region38: #{tpu_custom_call.1} parent=0
    _
  %s7 = ssub.s32 1, %s5
  %s8 = scalar_select 0, %s7, %s5
  $region1: #{tpu_custom_call.1} parent=0
    #allocation2 [shape = 'u8[3072]{0}', space=vmem, size = 0xc00, scoped, tag = 'input window, operand 0, single buffered']
    #allocation3 [shape = 's32[1]{0}', space=sflag, size = 0x4, scoped, tag = 'scoped memory for tpu_custom_call.1']
    #allocation4 [shape = 's32[1]{0}', space=sflag, size = 0x4, scoped, tag = 'scoped memory for tpu_custom_call.1']
    #allocation5 [shape = 'u8[442368]{0}', space=vmem, size = 0x6c000, scoped, tag = 'input window, operand 1, single buffered']
    #allocation6 [shape = 's32[1]{0}', space=sflag, size = 0x4, scoped, tag = 'scoped memory for tpu_custom_call.1']
    #allocation7 [shape = 'u8[159744]{0}', space=vmem, size = 0x27000, scoped, tag = 'input window, operand 2, single buffered']
    #allocation8 [shape = 'u8[1024]{0}', space=vmem, size = 0x400, scoped, tag = 'output window, operand 0, single buffered']
    %9 = vsyncpa [#allocation3], 0
    %10 = vsyncpa [#allocation6], 0
    %11 = vsyncpa [#allocation4], 0
    // Predicated region
    $region2: #{tpu_custom_call.1} parent=1 // pred_check
      _
    $region3: #{tpu_custom_call.1} parent=1 // pred_check_branch
      %13 = sbr.rel (0) target = $region5
    $region4: #{tpu_custom_call.1} parent=1 // pred_region
      %s15 = ssub.s32 96, 96
      %16 = vsyncadd [#allocation3], %s15
      %s18 = sshll.u32 [#allocation2], 4
      %s19 = int_to_ptr.vmem [resolvable:$true] %s18
      %21 = dma.hbm_to_vmem [thread:$0]  %s0, 96, %s19, [#allocation3]
    $region5: #{tpu_custom_call.1} parent=1 // pred_fallthru
      _
    // Predicated region
    $region6: #{tpu_custom_call.1} parent=1 // pred_check
      _
    $region7: #{tpu_custom_call.1} parent=1 // pred_check_branch
      %23 = sbr.rel (0) target = $region9
    $region8: #{tpu_custom_call.1} parent=1 // pred_region
      %s25 = ssub.s32 13824, 13824
      %26 = vsyncadd [#allocation6], %s25
      %s27 = sshll.u32 [#allocation5], 4
      %s28 = int_to_ptr.vmem [resolvable:$true] %s27
      %33 = dma.hbm_to_vmem [thread:$0]  %s1, 13824, %s28, [#allocation6], 384, 384, 24
    $region9: #{tpu_custom_call.1} parent=1 // pred_fallthru
      _
    // Predicated region
    $region10: #{tpu_custom_call.1} parent=1 // pred_check
      _
    $region11: #{tpu_custom_call.1} parent=1 // pred_check_branch
      %35 = sbr.rel (0) target = $region13
    $region12: #{tpu_custom_call.1} parent=1 // pred_region
      %s37 = ssub.s32 4992, 4992
      %38 = vsyncadd [#allocation6], %s37
      %s39 = sshll.u32 [#allocation7], 4
      %s40 = int_to_ptr.vmem [resolvable:$true] %s39
      %45 = dma.hbm_to_vmem [thread:$0]  %s2, 4992, %s40, [#allocation6], 128, 128, 8
    $region13: #{tpu_custom_call.1} parent=1 // pred_fallthru
      _
    // Predicated region
    $region14: #{tpu_custom_call.1} parent=1 // pred_check
      _
    $region15: #{tpu_custom_call.1} parent=1 // pred_check_branch
      %47 = sbr.rel (0) target = $region17
    $region16: #{tpu_custom_call.1} parent=1 // pred_region
      _
    $region17: #{tpu_custom_call.1} parent=1 // pred_fallthru
      _
    // Predicated region
    $region18: #{tpu_custom_call.1} parent=1 // pred_check
      _
    $region19: #{tpu_custom_call.1} parent=1 // pred_check_branch
      %49 = sbr.rel (0) target = $region21
    $region20: #{tpu_custom_call.1} parent=1 // pred_region
      %50 = dma.done [#allocation3], 96
    $region21: #{tpu_custom_call.1} parent=1 // pred_fallthru
      _
    // Predicated region
    $region22: #{tpu_custom_call.1} parent=1 // pred_check
      _
    $region23: #{tpu_custom_call.1} parent=1 // pred_check_branch
      %52 = sbr.rel (0) target = $region25
    $region24: #{tpu_custom_call.1} parent=1 // pred_region
      %53 = dma.done [#allocation6], 13824
    $region25: #{tpu_custom_call.1} parent=1 // pred_fallthru
      _
    // Predicated region
    $region26: #{tpu_custom_call.1} parent=1 // pred_check
      _
    $region27: #{tpu_custom_call.1} parent=1 // pred_check_branch
      %55 = sbr.rel (0) target = $region29
    $region28: #{tpu_custom_call.1} parent=1 // pred_region
      %56 = dma.done [#allocation6], 4992
    $region29: #{tpu_custom_call.1} parent=1 // pred_fallthru
      _
    %v57 = vld [vmem:[#allocation2] sm:$0x3f]
    %v58 = vld [vmem:[#allocation5] sm:$0xff]
    %v59 = vld [vmem:[#allocation5 + $0x8] sm:$0xff]
    %v60 = vld [vmem:[#allocation5 + $0x10] sm:$0xff]
    %v61 = vld [vmem:[#allocation5 + $0x18] sm:$0xff]
    %v62 = vld [vmem:[#allocation5 + $0x20] sm:$0xff]
    %v63 = vld [vmem:[#allocation5 + $0x28] sm:$0xff]
    %v64 = vld [vmem:[#allocation5 + $0x30] sm:$0xff]
    %v65 = vld [vmem:[#allocation5 + $0x38] sm:$0xff]
    %v66 = vld [vmem:[#allocation5 + $0x40] sm:$0xff]
    %v67 = vld [vmem:[#allocation5 + $0x48] sm:$0xff]
    %v68 = vld [vmem:[#allocation5 + $0x50] sm:$0xff]
    %v69 = vld [vmem:[#allocation5 + $0x58] sm:$0xff]
    %v70 = vld [vmem:[#allocation5 + $0x60] sm:$0xff]
    %v71 = vld [vmem:[#allocation5 + $0x68] sm:$0xff]
    %v72 = vld [vmem:[#allocation5 + $0x70] sm:$0xff]
    %v73 = vld [vmem:[#allocation5 + $0x78] sm:$0xff]
    %v74 = vld [vmem:[#allocation5 + $0x80] sm:$0xff]
    %v75 = vld [vmem:[#allocation5 + $0x88] sm:$0xff]
    %v76 = vld [vmem:[#allocation5 + $0x90] sm:$0xff]
    %v77 = vld [vmem:[#allocation5 + $0x98] sm:$0xff]
    %v78 = vld [vmem:[#allocation5 + $0xa0] sm:$0xff]
    %v79 = vld [vmem:[#allocation5 + $0xa8] sm:$0xff]
    %v80 = vld [vmem:[#allocation5 + $0xb0] sm:$0xff]
    %v81 = vld [vmem:[#allocation5 + $0xb8] sm:$0xff]
    %v82 = vld [vmem:[#allocation5 + $0xc0] sm:$0xff]
    %v83 = vld [vmem:[#allocation5 + $0xc8] sm:$0xff]
    %v84 = vld [vmem:[#allocation5 + $0xd0] sm:$0xff]
    %v85 = vld [vmem:[#allocation5 + $0xd8] sm:$0xff]
    %v86 = vld [vmem:[#allocation5 + $0xe0] sm:$0xff]
    %v87 = vld [vmem:[#allocation5 + $0xe8] sm:$0xff]
    %v88 = vld [vmem:[#allocation5 + $0xf0] sm:$0xff]
    %v89 = vld [vmem:[#allocation5 + $0xf8] sm:$0xff]
    %v90 = vld [vmem:[#allocation5 + $0x100] sm:$0xff]
    %v91 = vld [vmem:[#allocation5 + $0x108] sm:$0xff]
    %v92 = vld [vmem:[#allocation5 + $0x110] sm:$0xff]
    %v93 = vld [vmem:[#allocation5 + $0x118] sm:$0xff]
    %v94 = vld [vmem:[#allocation5 + $0x120] sm:$0xff]
    %v95 = vld [vmem:[#allocation5 + $0x128] sm:$0xff]
    %v96 = vld [vmem:[#allocation5 + $0x130] sm:$0xff]
    %v97 = vld [vmem:[#allocation5 + $0x138] sm:$0xff]
    %v98 = vld [vmem:[#allocation5 + $0x140] sm:$0xff]
    %v99 = vld [vmem:[#allocation5 + $0x148] sm:$0xff]
    %v100 = vld [vmem:[#allocation5 + $0x150] sm:$0xff]
    %v101 = vld [vmem:[#allocation5 + $0x158] sm:$0xff]
    %v102 = vld [vmem:[#allocation5 + $0x160] sm:$0xff]
    %v103 = vld [vmem:[#allocation5 + $0x168] sm:$0xff]
    %v104 = vld [vmem:[#allocation5 + $0x170] sm:$0xff]
    %v105 = vld [vmem:[#allocation5 + $0x178] sm:$0xff]
    %v106 = vld [vmem:[#allocation5 + $0x180] sm:$0xff]
    %v107 = vld [vmem:[#allocation5 + $0x188] sm:$0xff]
    %v108 = vld [vmem:[#allocation5 + $0x190] sm:$0xff]
    %v109 = vld [vmem:[#allocation5 + $0x198] sm:$0xff]
    %v110 = vld [vmem:[#allocation5 + $0x1a0] sm:$0xff]
    %v111 = vld [vmem:[#allocation5 + $0x1a8] sm:$0xff]
    %v112 = vld [vmem:[#allocation5 + $0x1b0] sm:$0xff]
    %v113 = vld [vmem:[#allocation5 + $0x1b8] sm:$0xff]
    %v114 = vld [vmem:[#allocation5 + $0x1c0] sm:$0xff]
    %v115 = vld [vmem:[#allocation5 + $0x1c8] sm:$0xff]
    %v116 = vld [vmem:[#allocation5 + $0x1d0] sm:$0xff]
    %v117 = vld [vmem:[#allocation5 + $0x1d8] sm:$0xff]
    %v118 = vld [vmem:[#allocation5 + $0x1e0] sm:$0xff]
    %v119 = vld [vmem:[#allocation5 + $0x1e8] sm:$0xff]
    %v120 = vld [vmem:[#allocation5 + $0x1f0] sm:$0xff]
    %v121 = vld [vmem:[#allocation5 + $0x1f8] sm:$0xff]
    %v122 = vld [vmem:[#allocation5 + $0x200] sm:$0xff]
    %v123 = vld [vmem:[#allocation5 + $0x208] sm:$0xff]
    %v124 = vld [vmem:[#allocation5 + $0x210] sm:$0xff]
    %v125 = vld [vmem:[#allocation5 + $0x218] sm:$0xff]
    %v126 = vld [vmem:[#allocation5 + $0x220] sm:$0xff]
    %v127 = vld [vmem:[#allocation5 + $0x228] sm:$0xff]
    %v128 = vld [vmem:[#allocation5 + $0x230] sm:$0xff]
    %v129 = vld [vmem:[#allocation5 + $0x238] sm:$0xff]
    %v130 = vld [vmem:[#allocation5 + $0x240] sm:$0xff]
    %v131 = vld [vmem:[#allocation5 + $0x248] sm:$0xff]
    %v132 = vld [vmem:[#allocation5 + $0x250] sm:$0xff]
    %v133 = vld [vmem:[#allocation5 + $0x258] sm:$0xff]
    %v134 = vld [vmem:[#allocation5 + $0x260] sm:$0xff]
    %v135 = vld [vmem:[#allocation5 + $0x268] sm:$0xff]
    %v136 = vld [vmem:[#allocation5 + $0x270] sm:$0xff]
    %v137 = vld [vmem:[#allocation5 + $0x278] sm:$0xff]
    %v138 = vld [vmem:[#allocation5 + $0x280] sm:$0xff]
    %v139 = vld [vmem:[#allocation5 + $0x288] sm:$0xff]
    %v140 = vld [vmem:[#allocation5 + $0x290] sm:$0xff]
    %v141 = vld [vmem:[#allocation5 + $0x298] sm:$0xff]
    %v142 = vld [vmem:[#allocation5 + $0x2a0] sm:$0xff]
    %v143 = vld [vmem:[#allocation5 + $0x2a8] sm:$0xff]
    %v144 = vld [vmem:[#allocation5 + $0x2b0] sm:$0xff]
    %v145 = vld [vmem:[#allocation5 + $0x2b8] sm:$0xff]
    %v146 = vld [vmem:[#allocation5 + $0x2c0] sm:$0xff]
    %v147 = vld [vmem:[#allocation5 + $0x2c8] sm:$0xff]
    %v148 = vld [vmem:[#allocation5 + $0x2d0] sm:$0xff]
    %v149 = vld [vmem:[#allocation5 + $0x2d8] sm:$0xff]
    %v150 = vld [vmem:[#allocation5 + $0x2e0] sm:$0xff]
    %v151 = vld [vmem:[#allocation5 + $0x2e8] sm:$0xff]
    %v152 = vld [vmem:[#allocation5 + $0x2f0] sm:$0xff]
    %v153 = vld [vmem:[#allocation5 + $0x2f8] sm:$0xff]
    %v154 = vld [vmem:[#allocation5 + $0x300] sm:$0xff]
    %v155 = vld [vmem:[#allocation5 + $0x308] sm:$0xff]
    %v156 = vld [vmem:[#allocation5 + $0x310] sm:$0xff]
    %v157 = vld [vmem:[#allocation5 + $0x318] sm:$0xff]
    %v158 = vld [vmem:[#allocation5 + $0x320] sm:$0xff]
    %v159 = vld [vmem:[#allocation5 + $0x328] sm:$0xff]
    %v160 = vld [vmem:[#allocation5 + $0x330] sm:$0xff]
    %v161 = vld [vmem:[#allocation5 + $0x338] sm:$0xff]
    %v162 = vld [vmem:[#allocation5 + $0x340] sm:$0xff]
    %v163 = vld [vmem:[#allocation5 + $0x348] sm:$0xff]
    %v164 = vld [vmem:[#allocation5 + $0x350] sm:$0xff]
    %v165 = vld [vmem:[#allocation5 + $0x358] sm:$0xff]
    %v167 = vcombine.high %v57, %v57
    %v169 = vunpack.c.l.s4 1983009808
    %v170 = vunpack.c.0.s8 %v169
    %v171 = vlaneseq
    %v172 = vshrl.u32 %v171, 7
    %v173 = vsub.s32 %v170, %v172
    %v174 = vrot.slane %v57, %v173
    %v176 = vunpack.c.l.s4 1983009808
    %v177 = vunpack.c.0.s8 %v176
    %v178 = vlaneseq
    %v179 = vshrl.u32 %v178, 7
    %v180 = vsub.s32 %v177, %v179
    %v181 = vrot.slane %v167, %v180
    %v182 = vcombine.high %v174, %v174
    %vm185 = vcmask 261120
    %v186 = vsel %vm185, %v181, 0
    %188 = vmatprep.subr.mxu0 %v59
    %189 = vmatpush1.msra.mxu0 %v58
    %190 = vmatprep.subr.mxu0 %v62
    %191 = vmatpush1.msra.mxu0 %v61
    %192 = vmatprep.subr.mxu0 %v65
    %193 = vmatpush1.msra.mxu0 %v64
    %194 = vmatprep.subr.mxu0 %v68
    %195 = vmatpush1.msra.mxu0 %v67
    %196 = vmatprep.subr.mxu0 %v71
    %197 = vmatpush1.msra.mxu0 %v70
    %198 = vmatprep.subr.mxu0 %v74
    %199 = vmatpush1.msra.mxu0 %v73
    %200 = vmatprep.subr.mxu0 %v77
    %201 = vmatpush1.msra.mxu0 %v76
    %202 = vmatprep.subr.mxu0 %v80
    %203 = vmatpush1.msra.mxu0 %v79
    %204 = vmatprep.subr.mxu0 %v83
    %205 = vmatpush1.msra.mxu0 %v82
    %206 = vmatprep.subr.mxu0 %v86
    %207 = vmatpush1.msra.mxu0 %v85
    %208 = vmatprep.subr.mxu0 %v89
    %209 = vmatpush1.msra.mxu0 %v88
    %210 = vmatprep.subr.mxu0 %v92
    %211 = vmatpush1.msra.mxu0 %v91
    %212 = vmatprep.subr.mxu0 %v95
    %213 = vmatpush1.msra.mxu0 %v94
    %214 = vmatprep.subr.mxu0 %v98
    %215 = vmatpush1.msra.mxu0 %v97
    %216 = vmatprep.subr.mxu0 %v101
    %217 = vmatpush1.msra.mxu0 %v100
    %218 = vmatprep.subr.mxu0 %v104
    %219 = vmatpush1.msra.mxu0 %v103
    %220 = vmatprep.subr.mxu0 %v107
    %221 = vmatpush1.msra.mxu0 %v106
    %222 = vmatprep.subr.mxu0 %v110
    %223 = vmatpush1.msra.mxu0 %v109
    %224 = vmatprep.subr.mxu0 %v113
    %225 = vmatpush1.msra.mxu0 %v112
    %226 = vmatprep.subr.mxu0 %v116
    %227 = vmatpush1.msra.mxu0 %v115
    %228 = vmatprep.subr.mxu0 %v119
    %229 = vmatpush1.msra.mxu0 %v118
    %230 = vmatprep.subr.mxu0 %v122
    %231 = vmatpush1.msra.mxu0 %v121
    %232 = vmatprep.subr.mxu0 %v125
    %233 = vmatpush1.msra.mxu0 %v124
    %234 = vmatprep.subr.mxu0 %v128
    %235 = vmatpush1.msra.mxu0 %v127
    %236 = vmatprep.subr.mxu0 %v131
    %237 = vmatpush1.msra.mxu0 %v130
    %238 = vmatprep.subr.mxu0 %v134
    %239 = vmatpush1.msra.mxu0 %v133
    %240 = vmatprep.subr.mxu0 %v137
    %241 = vmatpush1.msra.mxu0 %v136
    %242 = vmatprep.subr.mxu0 %v140
    %243 = vmatpush1.msra.mxu0 %v139
    %244 = vmatprep.subr.mxu0 %v143
    %245 = vmatpush1.msra.mxu0 %v142
    %246 = vmatprep.subr.mxu0 %v146
    %247 = vmatpush1.msra.mxu0 %v145
    %248 = vmatprep.subr.mxu0 %v149
    %249 = vmatpush1.msra.mxu0 %v148
    %250 = vmatprep.subr.mxu0 %v152
    %251 = vmatpush1.msra.mxu0 %v151
    %252 = vmatprep.mubr.f32.mxu0 %v182
    %253 = vmatmul.mubr.f32.gmra.mrb[0].mxu0 %v174
    %v254 = vpop.f32.mrb[0].mxu0
    %v255 = vadd.f32 0.0, %v254
    %v256 = vpop.f32.mrb[0].mxu0
    %v257 = vadd.f32 0.0, %v256
    %258 = vdwg.mxu0
    %259 = vmatprep.subr.mxu0 %v155
    %260 = vmatpush1.msra.mxu0 %v154
    %261 = vmatprep.subr.mxu0 %v158
    %262 = vmatpush1.msra.mxu0 %v157
    %263 = vmatprep.subr.mxu0 %v161
    %264 = vmatpush1.msra.mxu0 %v160
    %265 = vmatprep.subr.mxu0 %v164
    %266 = vmatpush1.msra.mxu0 %v163
    %267 = vmatprep.subr.mxu0 0.0
    %268 = vmatpush1.msra.mxu0 0.0
    %269 = vmatprep.subr.mxu0 0.0
    %270 = vmatpush1.msra.mxu0 0.0
    %271 = vmatprep.subr.mxu0 0.0
    %272 = vmatpush1.msra.mxu0 0.0
    %273 = vmatprep.subr.mxu0 0.0
    %274 = vmatpush1.msra.mxu0 0.0
    %275 = vmatprep.subr.mxu0 0.0
    %276 = vmatpush1.msra.mxu0 0.0
    %277 = vmatprep.subr.mxu0 0.0
    %278 = vmatpush1.msra.mxu0 0.0
    %279 = vmatprep.subr.mxu0 0.0
    %280 = vmatpush1.msra.mxu0 0.0
    %281 = vmatprep.subr.mxu0 0.0
    %282 = vmatpush1.msra.mxu0 0.0
    %283 = vmatprep.subr.mxu0 0.0
    %284 = vmatpush1.msra.mxu0 0.0
    %285 = vmatprep.subr.mxu0 0.0
    %286 = vmatpush1.msra.mxu0 0.0
    %287 = vmatprep.subr.mxu0 0.0
    %288 = vmatpush1.msra.mxu0 0.0
    %289 = vmatprep.subr.mxu0 0.0
    %290 = vmatpush1.msra.mxu0 0.0
    %291 = vmatprep.subr.mxu0 0.0
    %292 = vmatpush1.msra.mxu0 0.0
    %293 = vmatprep.subr.mxu0 0.0
    %294 = vmatpush1.msra.mxu0 0.0
    %295 = vmatprep.subr.mxu0 0.0
    %296 = vmatpush1.msra.mxu0 0.0
    %297 = vmatprep.subr.mxu0 0.0
    %298 = vmatpush1.msra.mxu0 0.0
    %299 = vmatprep.subr.mxu0 0.0
    %300 = vmatpush1.msra.mxu0 0.0
    %301 = vmatprep.subr.mxu0 0.0
    %302 = vmatpush1.msra.mxu0 0.0
    %303 = vmatprep.subr.mxu0 0.0
    %304 = vmatpush1.msra.mxu0 0.0
    %305 = vmatprep.subr.mxu0 0.0
    %306 = vmatpush1.msra.mxu0 0.0
    %307 = vmatprep.subr.mxu0 0.0
    %308 = vmatpush1.msra.mxu0 0.0
    %309 = vmatprep.subr.mxu0 0.0
    %310 = vmatpush1.msra.mxu0 0.0
    %311 = vmatprep.subr.mxu0 0.0
    %312 = vmatpush1.msra.mxu0 0.0
    %313 = vmatprep.subr.mxu0 0.0
    %314 = vmatpush1.msra.mxu0 0.0
    %315 = vmatprep.subr.mxu0 0.0
    %316 = vmatpush1.msra.mxu0 0.0
    %317 = vmatprep.subr.mxu0 0.0
    %318 = vmatpush1.msra.mxu0 0.0
    %319 = vmatprep.subr.mxu0 0.0
    %320 = vmatpush1.msra.mxu0 0.0
    %321 = vmatprep.subr.mxu0 0.0
    %322 = vmatpush1.msra.mxu0 0.0
    %323 = vmatprep.mubr.f32.mxu0 0.0
    %324 = vmatmul.mubr.f32.gmra.mrb[0].mxu0 %v186
    %v325 = vpop.f32.mrb[0].mxu0
    %v326 = vadd.f32 %v255, %v325
    %v327 = vpop.f32.mrb[0].mxu0
    %v328 = vadd.f32 %v257, %v327
    %329 = vdwg.mxu0
    %330 = vmatprep.subr.mxu0 0.0
    %331 = vmatpush1.msra.mxu0 %v60
    %332 = vmatprep.subr.mxu0 0.0
    %333 = vmatpush1.msra.mxu0 %v63
    %334 = vmatprep.subr.mxu0 0.0
    %335 = vmatpush1.msra.mxu0 %v66
    %336 = vmatprep.subr.mxu0 0.0
    %337 = vmatpush1.msra.mxu0 %v69
    %338 = vmatprep.subr.mxu0 0.0
    %339 = vmatpush1.msra.mxu0 %v72
    %340 = vmatprep.subr.mxu0 0.0
    %341 = vmatpush1.msra.mxu0 %v75
    %342 = vmatprep.subr.mxu0 0.0
    %343 = vmatpush1.msra.mxu0 %v78
    %344 = vmatprep.subr.mxu0 0.0
    %345 = vmatpush1.msra.mxu0 %v81
    %346 = vmatprep.subr.mxu0 0.0
    %347 = vmatpush1.msra.mxu0 %v84
    %348 = vmatprep.subr.mxu0 0.0
    %349 = vmatpush1.msra.mxu0 %v87
    %350 = vmatprep.subr.mxu0 0.0
    %351 = vmatpush1.msra.mxu0 %v90
    %352 = vmatprep.subr.mxu0 0.0
    %353 = vmatpush1.msra.mxu0 %v93
    %354 = vmatprep.subr.mxu0 0.0
    %355 = vmatpush1.msra.mxu0 %v96
    %356 = vmatprep.subr.mxu0 0.0
    %357 = vmatpush1.msra.mxu0 %v99
    %358 = vmatprep.subr.mxu0 0.0
    %359 = vmatpush1.msra.mxu0 %v102
    %360 = vmatprep.subr.mxu0 0.0
    %361 = vmatpush1.msra.mxu0 %v105
    %362 = vmatprep.subr.mxu0 0.0
    %363 = vmatpush1.msra.mxu0 %v108
    %364 = vmatprep.subr.mxu0 0.0
    %365 = vmatpush1.msra.mxu0 %v111
    %366 = vmatprep.subr.mxu0 0.0
    %367 = vmatpush1.msra.mxu0 %v114
    %368 = vmatprep.subr.mxu0 0.0
    %369 = vmatpush1.msra.mxu0 %v117
    %370 = vmatprep.subr.mxu0 0.0
    %371 = vmatpush1.msra.mxu0 %v120
    %372 = vmatprep.subr.mxu0 0.0
    %373 = vmatpush1.msra.mxu0 %v123
    %374 = vmatprep.subr.mxu0 0.0
    %375 = vmatpush1.msra.mxu0 %v126
    %376 = vmatprep.subr.mxu0 0.0
    %377 = vmatpush1.msra.mxu0 %v129
    %378 = vmatprep.subr.mxu0 0.0
    %379 = vmatpush1.msra.mxu0 %v132
    %380 = vmatprep.subr.mxu0 0.0
    %381 = vmatpush1.msra.mxu0 %v135
    %382 = vmatprep.subr.mxu0 0.0
    %383 = vmatpush1.msra.mxu0 %v138
    %384 = vmatprep.subr.mxu0 0.0
    %385 = vmatpush1.msra.mxu0 %v141
    %386 = vmatprep.subr.mxu0 0.0
    %387 = vmatpush1.msra.mxu0 %v144
    %388 = vmatprep.subr.mxu0 0.0
    %389 = vmatpush1.msra.mxu0 %v147
    %390 = vmatprep.subr.mxu0 0.0
    %391 = vmatpush1.msra.mxu0 %v150
    %392 = vmatprep.subr.mxu0 0.0
    %393 = vmatpush1.msra.mxu0 %v153
    %394 = vmatprep.mubr.f32.mxu0 %v182
    %395 = vmatmul.mubr.f32.gmra.mrb[0].mxu0 %v174
    %v396 = vpop.f32.mrb[0].mxu0
    %v397 = vadd.f32 0.0, %v396
    %v398 = vpop.f32.mrb[0].mxu0
    %399 = vdwg.mxu0
    %400 = vmatprep.subr.mxu0 0.0
    %401 = vmatpush1.msra.mxu0 %v156
    %402 = vmatprep.subr.mxu0 0.0
    %403 = vmatpush1.msra.mxu0 %v159
    %404 = vmatprep.subr.mxu0 0.0
    %405 = vmatpush1.msra.mxu0 %v162
    %406 = vmatprep.subr.mxu0 0.0
    %407 = vmatpush1.msra.mxu0 %v165
    %408 = vmatprep.subr.mxu0 0.0
    %409 = vmatpush1.msra.mxu0 0.0
    %410 = vmatprep.subr.mxu0 0.0
    %411 = vmatpush1.msra.mxu0 0.0
    %412 = vmatprep.subr.mxu0 0.0
    %413 = vmatpush1.msra.mxu0 0.0
    %414 = vmatprep.subr.mxu0 0.0
    %415 = vmatpush1.msra.mxu0 0.0
    %416 = vmatprep.subr.mxu0 0.0
    %417 = vmatpush1.msra.mxu0 0.0
    %418 = vmatprep.subr.mxu0 0.0
    %419 = vmatpush1.msra.mxu0 0.0
    %420 = vmatprep.subr.mxu0 0.0
    %421 = vmatpush1.msra.mxu0 0.0
    %422 = vmatprep.subr.mxu0 0.0
    %423 = vmatpush1.msra.mxu0 0.0
    %424 = vmatprep.subr.mxu0 0.0
    %425 = vmatpush1.msra.mxu0 0.0
    %426 = vmatprep.subr.mxu0 0.0
    %427 = vmatpush1.msra.mxu0 0.0
    %428 = vmatprep.subr.mxu0 0.0
    %429 = vmatpush1.msra.mxu0 0.0
    %430 = vmatprep.subr.mxu0 0.0
    %431 = vmatpush1.msra.mxu0 0.0
    %432 = vmatprep.subr.mxu0 0.0
    %433 = vmatpush1.msra.mxu0 0.0
    %434 = vmatprep.subr.mxu0 0.0
    %435 = vmatpush1.msra.mxu0 0.0
    %436 = vmatprep.subr.mxu0 0.0
    %437 = vmatpush1.msra.mxu0 0.0
    %438 = vmatprep.subr.mxu0 0.0
    %439 = vmatpush1.msra.mxu0 0.0
    %440 = vmatprep.subr.mxu0 0.0
    %441 = vmatpush1.msra.mxu0 0.0
    %442 = vmatprep.subr.mxu0 0.0
    %443 = vmatpush1.msra.mxu0 0.0
    %444 = vmatprep.subr.mxu0 0.0
    %445 = vmatpush1.msra.mxu0 0.0
    %446 = vmatprep.subr.mxu0 0.0
    %447 = vmatpush1.msra.mxu0 0.0
    %448 = vmatprep.subr.mxu0 0.0
    %449 = vmatpush1.msra.mxu0 0.0
    %450 = vmatprep.subr.mxu0 0.0
    %451 = vmatpush1.msra.mxu0 0.0
    %452 = vmatprep.subr.mxu0 0.0
    %453 = vmatpush1.msra.mxu0 0.0
    %454 = vmatprep.subr.mxu0 0.0
    %455 = vmatpush1.msra.mxu0 0.0
    %456 = vmatprep.subr.mxu0 0.0
    %457 = vmatpush1.msra.mxu0 0.0
    %458 = vmatprep.subr.mxu0 0.0
    %459 = vmatpush1.msra.mxu0 0.0
    %460 = vmatprep.subr.mxu0 0.0
    %461 = vmatpush1.msra.mxu0 0.0
    %462 = vmatprep.subr.mxu0 0.0
    %463 = vmatpush1.msra.mxu0 0.0
    %464 = vmatprep.mubr.f32.mxu0 0.0
    %465 = vmatmul.mubr.f32.gmra.mrb[0].mxu0 %v186
    %v466 = vpop.f32.mrb[0].mxu0
    %v467 = vadd.f32 %v397, %v466
    %v468 = vpop.f32.mrb[0].mxu0
    %469 = vdwg.mxu0
    %v470 = vld [vmem:[#allocation7] sm:$0xff]
    %v471 = vld [vmem:[#allocation7 + $0x8] sm:$0xff]
    %v472 = vld [vmem:[#allocation7 + $0x10] sm:$0xff]
    %v473 = vld [vmem:[#allocation7 + $0x18] sm:$0xff]
    %v474 = vld [vmem:[#allocation7 + $0x20] sm:$0xff]
    %v475 = vld [vmem:[#allocation7 + $0x28] sm:$0xff]
    %v476 = vld [vmem:[#allocation7 + $0x30] sm:$0xff]
    %v477 = vld [vmem:[#allocation7 + $0x38] sm:$0xff]
    %v478 = vld [vmem:[#allocation7 + $0x40] sm:$0xff]
    %v479 = vld [vmem:[#allocation7 + $0x48] sm:$0xff]
    %v480 = vld [vmem:[#allocation7 + $0x50] sm:$0xff]
    %v481 = vld [vmem:[#allocation7 + $0x58] sm:$0xff]
    %v482 = vld [vmem:[#allocation7 + $0x60] sm:$0xff]
    %v483 = vld [vmem:[#allocation7 + $0x68] sm:$0xff]
    %v484 = vld [vmem:[#allocation7 + $0x70] sm:$0xff]
    %v485 = vld [vmem:[#allocation7 + $0x78] sm:$0xff]
    %v486 = vld [vmem:[#allocation7 + $0x80] sm:$0xff]
    %v487 = vld [vmem:[#allocation7 + $0x88] sm:$0xff]
    %v488 = vld [vmem:[#allocation7 + $0x90] sm:$0xff]
    %v489 = vld [vmem:[#allocation7 + $0x98] sm:$0xff]
    %v490 = vld [vmem:[#allocation7 + $0xa0] sm:$0xff]
    %v491 = vld [vmem:[#allocation7 + $0xa8] sm:$0xff]
    %v492 = vld [vmem:[#allocation7 + $0xb0] sm:$0xff]
    %v493 = vld [vmem:[#allocation7 + $0xb8] sm:$0xff]
    %v494 = vld [vmem:[#allocation7 + $0xc0] sm:$0xff]
    %v495 = vld [vmem:[#allocation7 + $0xc8] sm:$0xff]
    %v496 = vld [vmem:[#allocation7 + $0xd0] sm:$0xff]
    %v497 = vld [vmem:[#allocation7 + $0xd8] sm:$0xff]
    %v498 = vld [vmem:[#allocation7 + $0xe0] sm:$0xff]
    %v499 = vld [vmem:[#allocation7 + $0xe8] sm:$0xff]
    %v500 = vld [vmem:[#allocation7 + $0xf0] sm:$0xff]
    %v501 = vld [vmem:[#allocation7 + $0xf8] sm:$0xff]
    %v502 = vld [vmem:[#allocation7 + $0x100] sm:$0xff]
    %v503 = vld [vmem:[#allocation7 + $0x108] sm:$0xff]
    %v504 = vld [vmem:[#allocation7 + $0x110] sm:$0xff]
    %v505 = vld [vmem:[#allocation7 + $0x118] sm:$0xff]
    %v506 = vld [vmem:[#allocation7 + $0x120] sm:$0xff]
    %v507 = vld [vmem:[#allocation7 + $0x128] sm:$0xff]
    %v508 = vld [vmem:[#allocation7 + $0x130] sm:$0x3]
    %vm509 = vcmask 408576
    %v511 = vsel %vm509, %v467, 0
    %vm513 = vcmask 1041408
    %v515 = vsel %vm513, %v508, 0
    %517 = vmatprep.subr.mxu0 0.0
    %518 = vmatpush1.msra.mxu0 %v470
    %519 = vmatprep.subr.mxu0 0.0
    %520 = vmatpush1.msra.mxu0 %v471
    %521 = vmatprep.subr.mxu0 0.0
    %522 = vmatpush1.msra.mxu0 %v472
    %523 = vmatprep.subr.mxu0 0.0
    %524 = vmatpush1.msra.mxu0 %v473
    %525 = vmatprep.subr.mxu0 0.0
    %526 = vmatpush1.msra.mxu0 %v474
    %527 = vmatprep.subr.mxu0 0.0
    %528 = vmatpush1.msra.mxu0 %v475
    %529 = vmatprep.subr.mxu0 0.0
    %530 = vmatpush1.msra.mxu0 %v476
    %531 = vmatprep.subr.mxu0 0.0
    %532 = vmatpush1.msra.mxu0 %v477
    %533 = vmatprep.subr.mxu0 0.0
    %534 = vmatpush1.msra.mxu0 %v478
    %535 = vmatprep.subr.mxu0 0.0
    %536 = vmatpush1.msra.mxu0 %v479
    %537 = vmatprep.subr.mxu0 0.0
    %538 = vmatpush1.msra.mxu0 %v480
    %539 = vmatprep.subr.mxu0 0.0
    %540 = vmatpush1.msra.mxu0 %v481
    %541 = vmatprep.subr.mxu0 0.0
    %542 = vmatpush1.msra.mxu0 %v482
    %543 = vmatprep.subr.mxu0 0.0
    %544 = vmatpush1.msra.mxu0 %v483
    %545 = vmatprep.subr.mxu0 0.0
    %546 = vmatpush1.msra.mxu0 %v484
    %547 = vmatprep.subr.mxu0 0.0
    %548 = vmatpush1.msra.mxu0 %v485
    %549 = vmatprep.subr.mxu0 0.0
    %550 = vmatpush1.msra.mxu0 %v486
    %551 = vmatprep.subr.mxu0 0.0
    %552 = vmatpush1.msra.mxu0 %v487
    %553 = vmatprep.subr.mxu0 0.0
    %554 = vmatpush1.msra.mxu0 %v488
    %555 = vmatprep.subr.mxu0 0.0
    %556 = vmatpush1.msra.mxu0 %v489
    %557 = vmatprep.subr.mxu0 0.0
    %558 = vmatpush1.msra.mxu0 %v490
    %559 = vmatprep.subr.mxu0 0.0
    %560 = vmatpush1.msra.mxu0 %v491
    %561 = vmatprep.subr.mxu0 0.0
    %562 = vmatpush1.msra.mxu0 %v492
    %563 = vmatprep.subr.mxu0 0.0
    %564 = vmatpush1.msra.mxu0 %v493
    %565 = vmatprep.subr.mxu0 0.0
    %566 = vmatpush1.msra.mxu0 %v494
    %567 = vmatprep.subr.mxu0 0.0
    %568 = vmatpush1.msra.mxu0 %v495
    %569 = vmatprep.subr.mxu0 0.0
    %570 = vmatpush1.msra.mxu0 %v496
    %571 = vmatprep.subr.mxu0 0.0
    %572 = vmatpush1.msra.mxu0 %v497
    %573 = vmatprep.subr.mxu0 0.0
    %574 = vmatpush1.msra.mxu0 %v498
    %575 = vmatprep.subr.mxu0 0.0
    %576 = vmatpush1.msra.mxu0 %v499
    %577 = vmatprep.subr.mxu0 0.0
    %578 = vmatpush1.msra.mxu0 %v500
    %579 = vmatprep.subr.mxu0 0.0
    %580 = vmatpush1.msra.mxu0 %v501
    %581 = vmatprep.mubr.f32.mxu0 %v328
    %582 = vmatmul.mubr.f32.gmra.mrb[0].mxu0 %v326
    %v583 = vpop.f32.mrb[0].mxu0
    %v584 = vadd.f32 0.0, %v583
    %v585 = vpop.f32.mrb[0].mxu0
    %586 = vdwg.mxu0
    %587 = vmatprep.subr.mxu0 0.0
    %588 = vmatpush1.msra.mxu0 %v502
    %589 = vmatprep.subr.mxu0 0.0
    %590 = vmatpush1.msra.mxu0 %v503
    %591 = vmatprep.subr.mxu0 0.0
    %592 = vmatpush1.msra.mxu0 %v504
    %593 = vmatprep.subr.mxu0 0.0
    %594 = vmatpush1.msra.mxu0 %v505
    %595 = vmatprep.subr.mxu0 0.0
    %596 = vmatpush1.msra.mxu0 %v506
    %597 = vmatprep.subr.mxu0 0.0
    %598 = vmatpush1.msra.mxu0 %v507
    %599 = vmatprep.subr.mxu0 0.0
    %600 = vmatpush1.msra.mxu0 %v515
    %601 = vmatprep.subr.mxu0 0.0
    %602 = vmatpush1.msra.mxu0 0.0
    %603 = vmatprep.subr.mxu0 0.0
    %604 = vmatpush1.msra.mxu0 0.0
    %605 = vmatprep.subr.mxu0 0.0
    %606 = vmatpush1.msra.mxu0 0.0
    %607 = vmatprep.subr.mxu0 0.0
    %608 = vmatpush1.msra.mxu0 0.0
    %609 = vmatprep.subr.mxu0 0.0
    %610 = vmatpush1.msra.mxu0 0.0
    %611 = vmatprep.subr.mxu0 0.0
    %612 = vmatpush1.msra.mxu0 0.0
    %613 = vmatprep.subr.mxu0 0.0
    %614 = vmatpush1.msra.mxu0 0.0
    %615 = vmatprep.subr.mxu0 0.0
    %616 = vmatpush1.msra.mxu0 0.0
    %617 = vmatprep.subr.mxu0 0.0
    %618 = vmatpush1.msra.mxu0 0.0
    %619 = vmatprep.subr.mxu0 0.0
    %620 = vmatpush1.msra.mxu0 0.0
    %621 = vmatprep.subr.mxu0 0.0
    %622 = vmatpush1.msra.mxu0 0.0
    %623 = vmatprep.subr.mxu0 0.0
    %624 = vmatpush1.msra.mxu0 0.0
    %625 = vmatprep.subr.mxu0 0.0
    %626 = vmatpush1.msra.mxu0 0.0
    %627 = vmatprep.subr.mxu0 0.0
    %628 = vmatpush1.msra.mxu0 0.0
    %629 = vmatprep.subr.mxu0 0.0
    %630 = vmatpush1.msra.mxu0 0.0
    %631 = vmatprep.subr.mxu0 0.0
    %632 = vmatpush1.msra.mxu0 0.0
    %633 = vmatprep.subr.mxu0 0.0
    %634 = vmatpush1.msra.mxu0 0.0
    %635 = vmatprep.subr.mxu0 0.0
    %636 = vmatpush1.msra.mxu0 0.0
    %637 = vmatprep.subr.mxu0 0.0
    %638 = vmatpush1.msra.mxu0 0.0
    %639 = vmatprep.subr.mxu0 0.0
    %640 = vmatpush1.msra.mxu0 0.0
    %641 = vmatprep.subr.mxu0 0.0
    %642 = vmatpush1.msra.mxu0 0.0
    %643 = vmatprep.subr.mxu0 0.0
    %644 = vmatpush1.msra.mxu0 0.0
    %645 = vmatprep.subr.mxu0 0.0
    %646 = vmatpush1.msra.mxu0 0.0
    %647 = vmatprep.subr.mxu0 0.0
    %648 = vmatpush1.msra.mxu0 0.0
    %649 = vmatprep.subr.mxu0 0.0
    %650 = vmatpush1.msra.mxu0 0.0
    %651 = vmatprep.mubr.f32.mxu0 0.0
    %652 = vmatmul.mubr.f32.gmra.mrb[0].mxu0 %v511
    %v653 = vpop.f32.mrb[0].mxu0
    %v654 = vadd.f32 %v584, %v653
    %v655 = vpop.f32.mrb[0].mxu0
    %656 = vdwg.mxu0
    %v657 = vld [vmem:[%s3] sm:$0x1]
    %v659 = vlaneseq
    %v660 = vshrl.u32 %v659, 7
    %v661 = vsub.s32 0, %v660
    %v662 = vrot.slane %v657, %v661
    %v664 = vmul.f32 %v654, %v662
    %665 = vst [vmem:[#allocation8] sm:$0x3] %v664
    // Predicated region
    $region30: #{tpu_custom_call.1} parent=1 // pred_check
      _
    $region31: #{tpu_custom_call.1} parent=1 // pred_check_branch
      %667 = sbr.rel (0) target = $region33
    $region32: #{tpu_custom_call.1} parent=1 // pred_region
      %s669 = ssub.s32 32, 32
      %670 = vsyncadd [#allocation4], %s669
      %s672 = sshll.u32 [#allocation8], 4
      %s673 = int_to_ptr.vmem [resolvable:$true] %s672
      %675 = dma.vmem_to_hbm [thread:$0]  %s673, 32, %s4, [#allocation4]
    $region33: #{tpu_custom_call.1} parent=1 // pred_fallthru
      _
    // Predicated region
    $region34: #{tpu_custom_call.1} parent=1 // pred_check
      _
    $region35: #{tpu_custom_call.1} parent=1 // pred_check_branch
      %677 = sbr.rel (0) target = $region37
    $region36: #{tpu_custom_call.1} parent=1 // pred_region
      %678 = dma.done [#allocation4], 32
    $region37: #{tpu_custom_call.1} parent=1 // pred_fallthru
      _
    %679 = vsyncpa [#allocation3], 1
    %680 = vsyncpa [#allocation6], 1
    %681 = vsyncpa [#allocation4], 1

</llo_original>
